<compile_context>
chip_gen: v7x
topology: tpu7x:2x2x1
jax: 0.10.0
libtpu: 0.0.40
codegen_flags: <defaults>
</compile_context>

<pallas_src>
import jax
import jax.numpy as jnp
from jax.experimental import pallas as pl
from jax.experimental.pallas import tpu as pltpu


def _ceil_to(x, m):
    return -(-x // m) * m


def _choose_tiles(B, N, itemsize, target_bytes, max_fused_iters=256):
    """Jointly size (TB, TN) so each input block is ~target_bytes.

    Returns (TB, TN, RB) where RB is the row-block size used by the fused
    in-kernel accumulation loop (one full vreg of rows per dtype).
    """
    n_pad = _ceil_to(N, 128)
    rb = 8 if itemsize >= 4 else 16          # rows per fused row-block (1 vreg)
    if B <= rb:
        tb = B
        rb = B
    else:
        b_pad = _ceil_to(B, rb)
        # rows needed so a full-signal block reaches the byte target
        rows = -(-target_bytes // (n_pad * itemsize))
        tb = min(_ceil_to(max(rows, rb), rb), b_pad)
        # keep >=2 batch blocks (pipeline overlap + v7x 2nd TensorCore) when the
        # problem is big enough that blocks stay healthy
        if B * n_pad * itemsize >= 2 * target_bytes:
            tb = min(tb, max(rb, ((b_pad // 2) // rb) * rb))
        tb = min(tb, max_fused_iters * rb)   # bound unrolled kernel size
    # signal tile fills the remaining per-block byte budget (itemsize-aware)
    tn = max(128, (target_bytes // (tb * itemsize)) // 128 * 128)
    tn = min(tn, n_pad)
    row_blocks = -(-tb // rb)
    tn = min(tn, max(1, max_fused_iters // row_blocks) * 128)
    return tb, tn, rb


def _make_neg_pearson_kernel(N, TB, TN, RB, S, KS, needs_mask):
    G = TN // 128
    K_total = S * KS
    row_starts = list(range(0, TB, RB))

    def _accumulate(preds_ref, labels_ref, acc_ref, masked):
        # Column offset of the (global) last reduction block — the only block
        # that can contain the ragged-N boundary.
        tail_base = (K_total - 1) * TN
        for r0 in row_starts:
            rows = min(RB, TB - r0)
            # lane-wide partial sums for this row block, kept in vregs across
            # the whole tile; one VMEM read/write per stat per row-block per tile.
            px = acc_ref[r0:r0 + rows, 0:128]
            py = acc_ref[r0:r0 + rows, 128:256]
            pxy = acc_ref[r0:r0 + rows, 256:384]
            px2 = acc_ref[r0:r0 + rows, 384:512]
            py2 = acc_ref[r0:r0 + rows, 512:640]
            for g in range(G):
                c0 = g * 128
                if masked:
                    lo = tail_base + c0
                    if lo >= N:
                        continue            # fully padded group: contributes 0
                xg = preds_ref[r0:r0 + rows, c0:c0 + 128].astype(jnp.float32)
                yg = labels_ref[r0:r0 + rows, c0:c0 + 128].astype(jnp.float32)
                if masked and (tail_base + c0 + 128 > N):
                    lane = jax.lax.broadcasted_iota(jnp.int32, (rows, 128), 1)
                    valid = lane < (N - (tail_base + c0))
                    xg = jnp.where(valid, xg, 0.0)
                    yg = jnp.where(valid, yg, 0.0)
                px = px + xg
                py = py + yg
                pxy = pxy + xg * yg
                px2 = px2 + xg * xg
                py2 = py2 + yg * yg
            acc_ref[r0:r0 + rows, 0:128] = px
            acc_ref[r0:r0 + rows, 128:256] = py
            acc_ref[r0:r0 + rows, 256:384] = pxy
            acc_ref[r0:r0 + rows, 384:512] = px2
            acc_ref[r0:r0 + rows, 512:640] = py2

    def kernel(preds_ref, labels_ref, out_ref, acc_ref):
        k = pl.program_id(2)

        # --- init lane-wide accumulators at the first reduction step ----------
        @pl.when(k == 0)
        def _init():
            acc_ref[...] = jnp.zeros_like(acc_ref)

        # --- fused accumulation pass; tail mask only on the last global step --
        if not needs_mask:
            _accumulate(preds_ref, labels_ref, acc_ref, masked=False)
        elif K_total == 1:
            _accumulate(preds_ref, labels_ref, acc_ref, masked=True)
        else:
            is_tail = jnp.logical_and(pl.program_id(0) == S - 1, k == KS - 1)

            @pl.when(jnp.logical_not(is_tail))
            def _hot():
                _accumulate(preds_ref, labels_ref, acc_ref, masked=False)

            @pl.when(is_tail)
            def _tail():
                _accumulate(preds_ref, labels_ref, acc_ref, masked=True)

        # --- finalize: single cross-lane reduction per stat per output block --
        @pl.when(k == KS - 1)
        def _finalize():
            for r0 in row_starts:
                rows = min(RB, TB - r0)
                for j in range(5):
                    v = acc_ref[r0:r0 + rows, j * 128:(j + 1) * 128]
                    out_ref[r0:r0 + rows, j:j + 1] = jnp.sum(
                        v, axis=1, keepdims=True)

    return kernel


def neg_pearson_loss(preds, labels, *, target_block_bytes=2 * 1024 * 1024):
    """preds, labels: [B, N] (f32 or bf16). Returns scalar f32 loss.

    target_block_bytes ~2 MiB is safe on all generations (v7x included); on
    v5e/v6e (128 MiB VMEM) it may be raised to 4-8 MiB for very long signals.
    """
    assert preds.shape == labels.shape and preds.ndim == 2
    B, N = preds.shape
    itemsize = preds.dtype.itemsize

    TB, TN, RB = _choose_tiles(B, N, itemsize, target_block_bytes)
    BB = pl.cdiv(B, TB)
    K = pl.cdiv(N, TN)

    # v7x megacore: if there is only one batch block, split the reduction in
    # two "parallel" halves so the second TensorCore has work.
    if BB == 1 and K >= 2 and K % 2 == 0:
        S, KS = 2, K // 2
    else:
        S, KS = 1, K
    needs_mask = (N % TN) != 0

    kernel = _make_neg_pearson_kernel(N, TB, TN, RB, S, KS, needs_mask)

    stats = pl.pallas_call(
        kernel,
        out_shape=jax.ShapeDtypeStruct((S, B, 5), jnp.float32),
        grid=(S, BB, KS),
        in_specs=[
            pl.BlockSpec((TB, TN), lambda s, i, k: (i, s * KS + k)),
            pl.BlockSpec((TB, TN), lambda s, i, k: (i, s * KS + k)),
        ],
        out_specs=pl.BlockSpec((None, TB, 5), lambda s, i, k: (s, i, 0)),
        scratch_shapes=[pltpu.VMEM((TB, 5 * 128), jnp.float32)],
        compiler_params=pltpu.CompilerParams(
            dimension_semantics=("parallel", "parallel", "arbitrary"),
            vmem_limit_bytes=32 * 1024 * 1024,
        ),
        cost_estimate=pl.CostEstimate(
            flops=8 * B * N,
            transcendentals=0,
            bytes_accessed=2 * B * N * itemsize + S * B * 5 * 4,
        ),
    )(preds, labels)

    # Tiny XLA epilogue: combine the S split, finish pearson + mean.
    st = stats.sum(axis=0)                                   # (B, 5)
    sx, sy, sxy, sx2, sy2 = (st[:, 0], st[:, 1], st[:, 2], st[:, 3], st[:, 4])
    n = jnp.float32(N)
    num = n * sxy - sx * sy
    # NOTE: matches the PyTorch reference exactly; constant rows give den == 0
    # -> NaN in the reference too (no epsilon added here).
    den = jnp.sqrt((n * sx2 - sx * sx) * (n * sy2 - sy * sy))
    pearson = num / den
    # The reference's two branches (1-p for p>=0, 1-|p| otherwise) are both
    # exactly 1 - |p|.
    per_row = 1.0 - jnp.abs(pearson)
    return jnp.mean(per_row)


def _neg_pearson_ref(preds, labels):
    x = preds.astype(jnp.float32)
    y = labels.astype(jnp.float32)
    _, N = x.shape
    sx = x.sum(1); sy = y.sum(1)
    sxy = (x * y).sum(1); sx2 = (x * x).sum(1); sy2 = (y * y).sum(1)
    p = (N * sxy - sx * sy) / jnp.sqrt((N * sx2 - sx ** 2) * (N * sy2 - sy ** 2))
    per = jnp.where(p >= 0, 1.0 - p, 1.0 - jnp.abs(p))
    return per.mean()


if __name__ == "__main__":
    key = jax.random.PRNGKey(0)
    k1, k2, k3, k4, k5, k6, k7, k8 = jax.random.split(key, 8)

    # Case 1: aligned shapes, single-block grid.
    B, N = 8, 1024
    preds = jax.random.normal(k1, (B, N), dtype=jnp.float32)
    labels = 0.7 * preds + 0.3 * jax.random.normal(k2, (B, N), dtype=jnp.float32)
    loss = neg_pearson_loss(preds, labels)
    jax.block_until_ready(loss)
    ref = _neg_pearson_ref(preds, labels)
    assert jnp.allclose(loss, ref, atol=1e-4, rtol=1e-4), (loss, ref)

    # Case 2: N not a multiple of 128 -> exercises the (last-step-only) tail mask.
    p2 = jax.random.normal(k3, (4, 1000), dtype=jnp.float32)
    l2 = 0.5 * p2 + 0.5 * jax.random.normal(k4, (4, 1000), dtype=jnp.float32)
    loss2 = neg_pearson_loss(p2, l2)
    jax.block_until_ready(loss2)
    ref2 = _neg_pearson_ref(p2, l2)
    assert jnp.allclose(loss2, ref2, atol=1e-4, rtol=1e-4), (loss2, ref2)

    # Case 3: bf16 inputs (half the HBM bytes); accumulation stays f32 in-kernel.
    p3 = preds.astype(jnp.bfloat16)
    l3 = labels.astype(jnp.bfloat16)
    loss3 = neg_pearson_loss(p3, l3)
    jax.block_until_ready(loss3)
    ref3 = _neg_pearson_ref(p3, l3)
    assert jnp.allclose(loss3, ref3, atol=1e-3, rtol=1e-3), (loss3, ref3)

    # Case 4: multi batch blocks with a partial batch tail + multi-step
    # reduction + ragged tail (small block target forces real tiling).
    p4 = jax.random.normal(k5, (20, 1536), dtype=jnp.float32)
    l4 = 0.6 * p4 + 0.4 * jax.random.normal(k6, (20, 1536), dtype=jnp.float32)
    loss4 = neg_pearson_loss(p4, l4, target_block_bytes=32 * 1024)
    jax.block_until_ready(loss4)
    ref4 = _neg_pearson_ref(p4, l4)
    assert jnp.allclose(loss4, ref4, atol=1e-4, rtol=1e-4), (loss4, ref4)

    # Case 5: single batch block with an even number of reduction steps ->
    # exercises the S=2 split-reduction path (v7x second-TensorCore work).
    p5 = jax.random.normal(k7, (8, 2048), dtype=jnp.float32)
    l5 = 0.4 * p5 + 0.6 * jax.random.normal(k8, (8, 2048), dtype=jnp.float32)
    loss5 = neg_pearson_loss(p5, l5, target_block_bytes=32 * 1024)
    jax.block_until_ready(loss5)
    ref5 = _neg_pearson_ref(p5, l5)
    assert jnp.allclose(loss5, ref5, atol=1e-4, rtol=1e-4), (loss5, ref5)

    print("KERNEL_OK")
</pallas_src>

<mosaic_0001>
module attributes {stable_mosaic.version = 11 : i64} {
  func.func @kernel(%arg0: i32, %arg1: i32, %arg2: i32, %arg3: memref<8x1024xf32, #tpu.memory_space<vmem>>, %arg4: memref<8x1024xf32, #tpu.memory_space<vmem>>, %arg5: memref<1x8x5xf32, #tpu.memory_space<vmem>>, %arg6: memref<8x640xf32, #tpu.memory_space<vmem>>) attributes {dimension_semantics = [#tpu.dimension_semantics<parallel>, #tpu.dimension_semantics<parallel>, #tpu.dimension_semantics<arbitrary>], iteration_bounds = array<i64: 1, 1, 1>, scalar_prefetch = 0 : i64, scratch_operands = 1 : i64, tpu.core_type = #tpu.core_type<tc>, window_params = [{transform_indices = @transform_0, window_bounds = array<i64: 8, 1024>}, {transform_indices = @transform_1, window_bounds = array<i64: 8, 1024>}, {transform_indices = @transform_2, window_bounds = array<i64: 1, 8, 5>}]} {
    %c0_i32 = arith.constant 0 : i32
    %0 = arith.cmpi eq, %arg2, %c0_i32 : i32
    %1 = arith.extui %0 : i1 to i32
    %c0_i32_0 = arith.constant 0 : i32
    %2 = arith.cmpi ne, %1, %c0_i32_0 : i32
    scf.if %2 {
      %cst = arith.constant 0.000000e+00 : f32
      %96 = vector.broadcast %cst : f32 to vector<8x640xf32>
      %c0_47 = arith.constant 0 : index
      %c0_48 = arith.constant 0 : index
      %97 = vector.load %arg6[%c0_47, %c0_48] : memref<8x640xf32, #tpu.memory_space<vmem>>, vector<8x640xf32>
      tpu.vector_store %arg6[%c0_47, %c0_48], %96 {strides = array<i32>} : memref<8x640xf32, #tpu.memory_space<vmem>>, vector<8x640xf32>,
    } else {
    }
    %c0 = arith.constant 0 : index
    %c0_1 = arith.constant 0 : index
    %3 = vector.load %arg6[%c0, %c0_1] : memref<8x640xf32, #tpu.memory_space<vmem>>, vector<8x128xf32>
    %c0_2 = arith.constant 0 : index
    %c128 = arith.constant 128 : index
    %4 = vector.load %arg6[%c0_2, %c128] : memref<8x640xf32, #tpu.memory_space<vmem>>, vector<8x128xf32>
    %c0_3 = arith.constant 0 : index
    %c256 = arith.constant 256 : index
    %5 = vector.load %arg6[%c0_3, %c256] : memref<8x640xf32, #tpu.memory_space<vmem>>, vector<8x128xf32>
    %c0_4 = arith.constant 0 : index
    %c384 = arith.constant 384 : index
    %6 = vector.load %arg6[%c0_4, %c384] : memref<8x640xf32, #tpu.memory_space<vmem>>, vector<8x128xf32>
    %c0_5 = arith.constant 0 : index
    %c512 = arith.constant 512 : index
    %7 = vector.load %arg6[%c0_5, %c512] : memref<8x640xf32, #tpu.memory_space<vmem>>, vector<8x128xf32>
    %c0_6 = arith.constant 0 : index
    %c0_7 = arith.constant 0 : index
    %8 = vector.load %arg3[%c0_6, %c0_7] : memref<8x1024xf32, #tpu.memory_space<vmem>>, vector<8x128xf32>
    %c0_8 = arith.constant 0 : index
    %c0_9 = arith.constant 0 : index
    %9 = vector.load %arg4[%c0_8, %c0_9] : memref<8x1024xf32, #tpu.memory_space<vmem>>, vector<8x128xf32>
    %10 = arith.addf %3, %8 : vector<8x128xf32>
    %11 = arith.addf %4, %9 : vector<8x128xf32>
    %12 = arith.mulf %8, %9 : vector<8x128xf32>
    %13 = arith.addf %5, %12 : vector<8x128xf32>
    %14 = arith.mulf %8, %8 : vector<8x128xf32>
    %15 = arith.addf %6, %14 : vector<8x128xf32>
    %16 = arith.mulf %9, %9 : vector<8x128xf32>
    %17 = arith.addf %7, %16 : vector<8x128xf32>
    %c0_10 = arith.constant 0 : index
    %c128_11 = arith.constant 128 : index
    %18 = vector.load %arg3[%c0_10, %c128_11] : memref<8x1024xf32, #tpu.memory_space<vmem>>, vector<8x128xf32>
    %c0_12 = arith.constant 0 : index
    %c128_13 = arith.constant 128 : index
    %19 = vector.load %arg4[%c0_12, %c128_13] : memref<8x1024xf32, #tpu.memory_space<vmem>>, vector<8x128xf32>
    %20 = arith.addf %10, %18 : vector<8x128xf32>
    %21 = arith.addf %11, %19 : vector<8x128xf32>
    %22 = arith.mulf %18, %19 : vector<8x128xf32>
    %23 = arith.addf %13, %22 : vector<8x128xf32>
    %24 = arith.mulf %18, %18 : vector<8x128xf32>
    %25 = arith.addf %15, %24 : vector<8x128xf32>
    %26 = arith.mulf %19, %19 : vector<8x128xf32>
    %27 = arith.addf %17, %26 : vector<8x128xf32>
    %c0_14 = arith.constant 0 : index
    %c256_15 = arith.constant 256 : index
    %28 = vector.load %arg3[%c0_14, %c256_15] : memref<8x1024xf32, #tpu.memory_space<vmem>>, vector<8x128xf32>
    %c0_16 = arith.constant 0 : index
    %c256_17 = arith.constant 256 : index
    %29 = vector.load %arg4[%c0_16, %c256_17] : memref<8x1024xf32, #tpu.memory_space<vmem>>, vector<8x128xf32>
    %30 = arith.addf %20, %28 : vector<8x128xf32>
    %31 = arith.addf %21, %29 : vector<8x128xf32>
    %32 = arith.mulf %28, %29 : vector<8x128xf32>
    %33 = arith.addf %23, %32 : vector<8x128xf32>
    %34 = arith.mulf %28, %28 : vector<8x128xf32>
    %35 = arith.addf %25, %34 : vector<8x128xf32>
    %36 = arith.mulf %29, %29 : vector<8x128xf32>
    %37 = arith.addf %27, %36 : vector<8x128xf32>
    %c0_18 = arith.constant 0 : index
    %c384_19 = arith.constant 384 : index
    %38 = vector.load %arg3[%c0_18, %c384_19] : memref<8x1024xf32, #tpu.memory_space<vmem>>, vector<8x128xf32>
    %c0_20 = arith.constant 0 : index
    %c384_21 = arith.constant 384 : index
    %39 = vector.load %arg4[%c0_20, %c384_21] : memref<8x1024xf32, #tpu.memory_space<vmem>>, vector<8x128xf32>
    %40 = arith.addf %30, %38 : vector<8x128xf32>
    %41 = arith.addf %31, %39 : vector<8x128xf32>
    %42 = arith.mulf %38, %39 : vector<8x128xf32>
    %43 = arith.addf %33, %42 : vector<8x128xf32>
    %44 = arith.mulf %38, %38 : vector<8x128xf32>
    %45 = arith.addf %35, %44 : vector<8x128xf32>
    %46 = arith.mulf %39, %39 : vector<8x128xf32>
    %47 = arith.addf %37, %46 : vector<8x128xf32>
    %c0_22 = arith.constant 0 : index
    %c512_23 = arith.constant 512 : index
    %48 = vector.load %arg3[%c0_22, %c512_23] : memref<8x1024xf32, #tpu.memory_space<vmem>>, vector<8x128xf32>
    %c0_24 = arith.constant 0 : index
    %c512_25 = arith.constant 512 : index
    %49 = vector.load %arg4[%c0_24, %c512_25] : memref<8x1024xf32, #tpu.memory_space<vmem>>, vector<8x128xf32>
    %50 = arith.addf %40, %48 : vector<8x128xf32>
    %51 = arith.addf %41, %49 : vector<8x128xf32>
    %52 = arith.mulf %48, %49 : vector<8x128xf32>
    %53 = arith.addf %43, %52 : vector<8x128xf32>
    %54 = arith.mulf %48, %48 : vector<8x128xf32>
    %55 = arith.addf %45, %54 : vector<8x128xf32>
    %56 = arith.mulf %49, %49 : vector<8x128xf32>
    %57 = arith.addf %47, %56 : vector<8x128xf32>
    %c0_26 = arith.constant 0 : index
    %c640 = arith.constant 640 : index
    %58 = vector.load %arg3[%c0_26, %c640] : memref<8x1024xf32, #tpu.memory_space<vmem>>, vector<8x128xf32>
    %c0_27 = arith.constant 0 : index
    %c640_28 = arith.constant 640 : index
    %59 = vector.load %arg4[%c0_27, %c640_28] : memref<8x1024xf32, #tpu.memory_space<vmem>>, vector<8x128xf32>
    %60 = arith.addf %50, %58 : vector<8x128xf32>
    %61 = arith.addf %51, %59 : vector<8x128xf32>
    %62 = arith.mulf %58, %59 : vector<8x128xf32>
    %63 = arith.addf %53, %62 : vector<8x128xf32>
    %64 = arith.mulf %58, %58 : vector<8x128xf32>
    %65 = arith.addf %55, %64 : vector<8x128xf32>
    %66 = arith.mulf %59, %59 : vector<8x128xf32>
    %67 = arith.addf %57, %66 : vector<8x128xf32>
    %c0_29 = arith.constant 0 : index
    %c768 = arith.constant 768 : index
    %68 = vector.load %arg3[%c0_29, %c768] : memref<8x1024xf32, #tpu.memory_space<vmem>>, vector<8x128xf32>
    %c0_30 = arith.constant 0 : index
    %c768_31 = arith.constant 768 : index
    %69 = vector.load %arg4[%c0_30, %c768_31] : memref<8x1024xf32, #tpu.memory_space<vmem>>, vector<8x128xf32>
    %70 = arith.addf %60, %68 : vector<8x128xf32>
    %71 = arith.addf %61, %69 : vector<8x128xf32>
    %72 = arith.mulf %68, %69 : vector<8x128xf32>
    %73 = arith.addf %63, %72 : vector<8x128xf32>
    %74 = arith.mulf %68, %68 : vector<8x128xf32>
    %75 = arith.addf %65, %74 : vector<8x128xf32>
    %76 = arith.mulf %69, %69 : vector<8x128xf32>
    %77 = arith.addf %67, %76 : vector<8x128xf32>
    %c0_32 = arith.constant 0 : index
    %c896 = arith.constant 896 : index
    %78 = vector.load %arg3[%c0_32, %c896] : memref<8x1024xf32, #tpu.memory_space<vmem>>, vector<8x128xf32>
    %c0_33 = arith.constant 0 : index
    %c896_34 = arith.constant 896 : index
    %79 = vector.load %arg4[%c0_33, %c896_34] : memref<8x1024xf32, #tpu.memory_space<vmem>>, vector<8x128xf32>
    %80 = arith.addf %70, %78 : vector<8x128xf32>
    %81 = arith.addf %71, %79 : vector<8x128xf32>
    %82 = arith.mulf %78, %79 : vector<8x128xf32>
    %83 = arith.addf %73, %82 : vector<8x128xf32>
    %84 = arith.mulf %78, %78 : vector<8x128xf32>
    %85 = arith.addf %75, %84 : vector<8x128xf32>
    %86 = arith.mulf %79, %79 : vector<8x128xf32>
    %87 = arith.addf %77, %86 : vector<8x128xf32>
    %c0_35 = arith.constant 0 : index
    %c0_36 = arith.constant 0 : index
    %88 = vector.load %arg6[%c0_35, %c0_36] : memref<8x640xf32, #tpu.memory_space<vmem>>, vector<8x128xf32>
    tpu.vector_store %arg6[%c0_35, %c0_36], %80 {strides = array<i32>} : memref<8x640xf32, #tpu.memory_space<vmem>>, vector<8x128xf32>,
    %c0_37 = arith.constant 0 : index
    %c128_38 = arith.constant 128 : index
    %89 = vector.load %arg6[%c0_37, %c128_38] : memref<8x640xf32, #tpu.memory_space<vmem>>, vector<8x128xf32>
    tpu.vector_store %arg6[%c0_37, %c128_38], %81 {strides = array<i32>} : memref<8x640xf32, #tpu.memory_space<vmem>>, vector<8x128xf32>,
    %c0_39 = arith.constant 0 : index
    %c256_40 = arith.constant 256 : index
    %90 = vector.load %arg6[%c0_39, %c256_40] : memref<8x640xf32, #tpu.memory_space<vmem>>, vector<8x128xf32>
    tpu.vector_store %arg6[%c0_39, %c256_40], %83 {strides = array<i32>} : memref<8x640xf32, #tpu.memory_space<vmem>>, vector<8x128xf32>,
    %c0_41 = arith.constant 0 : index
    %c384_42 = arith.constant 384 : index
    %91 = vector.load %arg6[%c0_41, %c384_42] : memref<8x640xf32, #tpu.memory_space<vmem>>, vector<8x128xf32>
    tpu.vector_store %arg6[%c0_41, %c384_42], %85 {strides = array<i32>} : memref<8x640xf32, #tpu.memory_space<vmem>>, vector<8x128xf32>,
    %c0_43 = arith.constant 0 : index
    %c512_44 = arith.constant 512 : index
    %92 = vector.load %arg6[%c0_43, %c512_44] : memref<8x640xf32, #tpu.memory_space<vmem>>, vector<8x128xf32>
    tpu.vector_store %arg6[%c0_43, %c512_44], %87 {strides = array<i32>} : memref<8x640xf32, #tpu.memory_space<vmem>>, vector<8x128xf32>,
    %c0_i32_45 = arith.constant 0 : i32
    %93 = arith.cmpi eq, %arg2, %c0_i32_45 : i32
    %94 = arith.extui %93 : i1 to i32
    %c0_i32_46 = arith.constant 0 : i32
    %95 = arith.cmpi ne, %94, %c0_i32_46 : i32
    scf.if %95 {
      %c0_47 = arith.constant 0 : index
      %c0_48 = arith.constant 0 : index
      %96 = vector.load %arg6[%c0_47, %c0_48] : memref<8x640xf32, #tpu.memory_space<vmem>>, vector<8x128xf32>
      %cst = arith.constant dense<0.000000e+00> : vector<8xf32>
      %97 = vector.multi_reduction <add>, %96, %cst [1] : vector<8x128xf32> to vector<8xf32>
      %98 = vector.shape_cast %97 : vector<8xf32> to vector<8x1xf32>
      %c0_49 = arith.constant 0 : index
      %c0_50 = arith.constant 0 : index
      %c0_51 = arith.constant 0 : index
      %99 = vector.load %arg5[%c0_49, %c0_50, %c0_51] : memref<1x8x5xf32, #tpu.memory_space<vmem>>, vector<1x8x1xf32>
      %100 = vector.shape_cast %99 : vector<1x8x1xf32> to vector<8x1xf32>
      %101 = vector.shape_cast %98 : vector<8x1xf32> to vector<1x8x1xf32>
      tpu.vector_store %arg5[%c0_49, %c0_50, %c0_51], %101 {strides = array<i32>} : memref<1x8x5xf32, #tpu.memory_space<vmem>>, vector<1x8x1xf32>,
      %c0_52 = arith.constant 0 : index
      %c128_53 = arith.constant 128 : index
      %102 = vector.load %arg6[%c0_52, %c128_53] : memref<8x640xf32, #tpu.memory_space<vmem>>, vector<8x128xf32>
      %cst_54 = arith.constant dense<0.000000e+00> : vector<8xf32>
      %103 = vector.multi_reduction <add>, %102, %cst_54 [1] : vector<8x128xf32> to vector<8xf32>
      %104 = vector.shape_cast %103 : vector<8xf32> to vector<8x1xf32>
      %c0_55 = arith.constant 0 : index
      %c0_56 = arith.constant 0 : index
      %c1 = arith.constant 1 : index
      %105 = vector.load %arg5[%c0_55, %c0_56, %c1] : memref<1x8x5xf32, #tpu.memory_space<vmem>>, vector<1x8x1xf32>
      %106 = vector.shape_cast %105 : vector<1x8x1xf32> to vector<8x1xf32>
      %107 = vector.shape_cast %104 : vector<8x1xf32> to vector<1x8x1xf32>
      tpu.vector_store %arg5[%c0_55, %c0_56, %c1], %107 {strides = array<i32>} : memref<1x8x5xf32, #tpu.memory_space<vmem>>, vector<1x8x1xf32>,
      %c0_57 = arith.constant 0 : index
      %c256_58 = arith.constant 256 : index
      %108 = vector.load %arg6[%c0_57, %c256_58] : memref<8x640xf32, #tpu.memory_space<vmem>>, vector<8x128xf32>
      %cst_59 = arith.constant dense<0.000000e+00> : vector<8xf32>
      %109 = vector.multi_reduction <add>, %108, %cst_59 [1] : vector<8x128xf32> to vector<8xf32>
      %110 = vector.shape_cast %109 : vector<8xf32> to vector<8x1xf32>
      %c0_60 = arith.constant 0 : index
      %c0_61 = arith.constant 0 : index
      %c2 = arith.constant 2 : index
      %111 = vector.load %arg5[%c0_60, %c0_61, %c2] : memref<1x8x5xf32, #tpu.memory_space<vmem>>, vector<1x8x1xf32>
      %112 = vector.shape_cast %111 : vector<1x8x1xf32> to vector<8x1xf32>
      %113 = vector.shape_cast %110 : vector<8x1xf32> to vector<1x8x1xf32>
      tpu.vector_store %arg5[%c0_60, %c0_61, %c2], %113 {strides = array<i32>} : memref<1x8x5xf32, #tpu.memory_space<vmem>>, vector<1x8x1xf32>,
      %c0_62 = arith.constant 0 : index
      %c384_63 = arith.constant 384 : index
      %114 = vector.load %arg6[%c0_62, %c384_63] : memref<8x640xf32, #tpu.memory_space<vmem>>, vector<8x128xf32>
      %cst_64 = arith.constant dense<0.000000e+00> : vector<8xf32>
      %115 = vector.multi_reduction <add>, %114, %cst_64 [1] : vector<8x128xf32> to vector<8xf32>
      %116 = vector.shape_cast %115 : vector<8xf32> to vector<8x1xf32>
      %c0_65 = arith.constant 0 : index
      %c0_66 = arith.constant 0 : index
      %c3 = arith.constant 3 : index
      %117 = vector.load %arg5[%c0_65, %c0_66, %c3] : memref<1x8x5xf32, #tpu.memory_space<vmem>>, vector<1x8x1xf32>
      %118 = vector.shape_cast %117 : vector<1x8x1xf32> to vector<8x1xf32>
      %119 = vector.shape_cast %116 : vector<8x1xf32> to vector<1x8x1xf32>
      tpu.vector_store %arg5[%c0_65, %c0_66, %c3], %119 {strides = array<i32>} : memref<1x8x5xf32, #tpu.memory_space<vmem>>, vector<1x8x1xf32>,
      %c0_67 = arith.constant 0 : index
      %c512_68 = arith.constant 512 : index
      %120 = vector.load %arg6[%c0_67, %c512_68] : memref<8x640xf32, #tpu.memory_space<vmem>>, vector<8x128xf32>
      %cst_69 = arith.constant dense<0.000000e+00> : vector<8xf32>
      %121 = vector.multi_reduction <add>, %120, %cst_69 [1] : vector<8x128xf32> to vector<8xf32>
      %122 = vector.shape_cast %121 : vector<8xf32> to vector<8x1xf32>
      %c0_70 = arith.constant 0 : index
      %c0_71 = arith.constant 0 : index
      %c4 = arith.constant 4 : index
      %123 = vector.load %arg5[%c0_70, %c0_71, %c4] : memref<1x8x5xf32, #tpu.memory_space<vmem>>, vector<1x8x1xf32>
      %124 = vector.shape_cast %123 : vector<1x8x1xf32> to vector<8x1xf32>
      %125 = vector.shape_cast %122 : vector<8x1xf32> to vector<1x8x1xf32>
      tpu.vector_store %arg5[%c0_70, %c0_71, %c4], %125 {strides = array<i32>} : memref<1x8x5xf32, #tpu.memory_space<vmem>>, vector<1x8x1xf32>,
    } else {
    }
    return
  }
  func.func @transform_0(%arg0: i32, %arg1: i32, %arg2: i32) -> (i32, i32) {
    %c1_i32 = arith.constant 1 : i32
    %0 = arith.muli %arg0, %c1_i32 : i32
    %1 = arith.addi %0, %arg2 : i32
    %c0_i32 = arith.constant 0 : i32
    return %arg1, %1 : i32, i32
  }
  func.func @transform_1(%arg0: i32, %arg1: i32, %arg2: i32) -> (i32, i32) {
    %c1_i32 = arith.constant 1 : i32
    %0 = arith.muli %arg0, %c1_i32 : i32
    %1 = arith.addi %0, %arg2 : i32
    %c0_i32 = arith.constant 0 : i32
    return %arg1, %1 : i32, i32
  }
  func.func @transform_2(%arg0: i32, %arg1: i32, %arg2: i32) -> (i32, i32, i32) {
    %c0_i32 = arith.constant 0 : i32
    %c0_i32_0 = arith.constant 0 : i32
    return %arg0, %arg1, %c0_i32 : i32, i32, i32
  }
}

</mosaic_0001>

<llo_original>
// kernel: tpu_custom_call.1
$region0: #{tpu_custom_call.1}
  #allocation0 [shape = 'u32[]', space=smem, size = 0x4, offset = 0x4, fixed_abs, tag = 'smem constant byte address 0x4 - core index']
  #allocation1 [shape = 'u32[144,128]{1,0:T(1,128)}', space=vmem, size = 0x12000, scoped, tag = 'internal scratch']
  #allocation2 [shape = 'f32[8,640]{1,0:T(8,128)}', space=vmem, size = 0x5000, scoped, tag = 'scratch operand']
  %s0 = inlined_call_operand.hbm [shape: f32[8,1024], index: 0, kind: input, shape index: {}]
  %s1 = inlined_call_operand.hbm [shape: f32[8,1024], index: 1, kind: input, shape index: {}]
  %s2 = inlined_call_operand.vmem [shape: f32[1,8,5], index: 2, kind: output, shape index: {}]
  %s3 = sld [smem:[#allocation0]]
  $region34: #{tpu_custom_call.1} parent=0
    _
  %s5 = ssub.s32 1, %s3
  %s6 = scalar_select 0, %s5, %s3
  $region1: #{tpu_custom_call.1} parent=0
    #allocation3 [shape = 'u8[32768]{0}', space=vmem, size = 0x8000, scoped, tag = 'input window, operand 0, single buffered']
    #allocation4 [shape = 's32[1]{0}', space=sflag, size = 0x4, scoped, tag = 'scoped memory for tpu_custom_call.1']
    #allocation5 [shape = 'u8[32768]{0}', space=vmem, size = 0x8000, scoped, tag = 'input window, operand 1, single buffered']
    #allocation6 [shape = 's32[1]{0}', space=sflag, size = 0x4, scoped, tag = 'scoped memory for tpu_custom_call.1']
    %7 = vsyncpa [#allocation4], 0
    %8 = vsyncpa [#allocation6], 0
    // Predicated region
    $region2: #{tpu_custom_call.1} parent=1 // pred_check
      _
    $region3: #{tpu_custom_call.1} parent=1 // pred_check_branch
      %10 = sbr.rel (0) target = $region5
    $region4: #{tpu_custom_call.1} parent=1 // pred_region
      %s11 = sadd.s32 0, 0
      %s12 = smul.u32 8, %s11
      %s14 = ssub.s32 1024, 1024
      %15 = vsyncadd [#allocation4], %s14
      %s16 = smul.addr %s12, 128
      %s17 = scalar_lea.hbm %s0, %s16
      %s19 = sshll.u32 [#allocation3], 4
      %s20 = int_to_ptr.vmem [resolvable:$true] %s19
      %22 = dma.hbm_to_vmem [thread:$0]  %s17, 1024, %s20, [#allocation4]
    $region5: #{tpu_custom_call.1} parent=1 // pred_fallthru
      _
    // Predicated region
    $region6: #{tpu_custom_call.1} parent=1 // pred_check
      _
    $region7: #{tpu_custom_call.1} parent=1 // pred_check_branch
      %24 = sbr.rel (0) target = $region9
    $region8: #{tpu_custom_call.1} parent=1 // pred_region
      %s25 = sadd.s32 0, 0
      %s26 = smul.u32 8, %s25
      %s28 = ssub.s32 1024, 1024
      %29 = vsyncadd [#allocation6], %s28
      %s30 = smul.addr %s26, 128
      %s31 = scalar_lea.hbm %s1, %s30
      %s33 = sshll.u32 [#allocation5], 4
      %s34 = int_to_ptr.vmem [resolvable:$true] %s33
      %36 = dma.hbm_to_vmem [thread:$0]  %s31, 1024, %s34, [#allocation6]
    $region9: #{tpu_custom_call.1} parent=1 // pred_fallthru
      _
    // Predicated region
    $region10: #{tpu_custom_call.1} parent=1 // pred_check
      _
    $region11: #{tpu_custom_call.1} parent=1 // pred_check_branch
      %38 = sbr.rel (0) target = $region13
    $region12: #{tpu_custom_call.1} parent=1 // pred_region
      %39 = dma.done [#allocation4], 1024
    $region13: #{tpu_custom_call.1} parent=1 // pred_fallthru
      _
    // Predicated region
    $region14: #{tpu_custom_call.1} parent=1 // pred_check
      _
    $region15: #{tpu_custom_call.1} parent=1 // pred_check_branch
      %41 = sbr.rel (0) target = $region17
    $region16: #{tpu_custom_call.1} parent=1 // pred_region
      %42 = dma.done [#allocation6], 1024
    $region17: #{tpu_custom_call.1} parent=1 // pred_fallthru
      _
    %s43 = sadd.s32 0, 0
    %s44 = smul.u32 8, %s43
    %s45 = sadd.s32 0, 0
    %s46 = smul.u32 8, %s45
    %p47 = scmp.eq.s32.totalorder 0, 0
    // Predicated region
    $region18: #{tpu_custom_call.1} parent=1 // pred_check
      %p48 = pneg %p47
    $region19: #{tpu_custom_call.1} parent=1 // pred_check_branch
      %50 = sbr.rel (%p48) target = $region21
    $region20: #{tpu_custom_call.1} parent=1 // pred_region
      %51 = vst [vmem:[#allocation2] sm:$0xff] 0.0
      %52 = vst [vmem:[#allocation2 + $0x8] sm:$0xff] 0.0
      %53 = vst [vmem:[#allocation2 + $0x10] sm:$0xff] 0.0
      %54 = vst [vmem:[#allocation2 + $0x18] sm:$0xff] 0.0
      %55 = vst [vmem:[#allocation2 + $0x20] sm:$0xff] 0.0
    $region21: #{tpu_custom_call.1} parent=1 // pred_fallthru
      _
    %v56 = vld [vmem:[#allocation2] sm:$0xff]
    %v57 = vld [vmem:[#allocation2 + $0x8] sm:$0xff]
    %v58 = vld [vmem:[#allocation2 + $0x10] sm:$0xff]
    %v59 = vld [vmem:[#allocation2 + $0x18] sm:$0xff]
    %v60 = vld [vmem:[#allocation2 + $0x20] sm:$0xff]
    %v61 = vld [vmem:[#allocation3] sm:$0xff]
    %v62 = vld [vmem:[#allocation5] sm:$0xff]
    %v63 = vadd.f32 %v56, %v61
    %v64 = vadd.f32 %v57, %v62
    %v65 = vmul.f32 %v61, %v62
    %v66 = vadd.f32 %v58, %v65
    %v67 = vmul.f32 %v61, %v61
    %v68 = vadd.f32 %v59, %v67
    %v69 = vmul.f32 %v62, %v62
    %v70 = vadd.f32 %v60, %v69
    %v71 = vld [vmem:[#allocation3 + $0x8] sm:$0xff]
    %v72 = vld [vmem:[#allocation5 + $0x8] sm:$0xff]
    %v73 = vadd.f32 %v63, %v71
    %v74 = vadd.f32 %v64, %v72
    %v75 = vmul.f32 %v71, %v72
    %v76 = vadd.f32 %v66, %v75
    %v77 = vmul.f32 %v71, %v71
    %v78 = vadd.f32 %v68, %v77
    %v79 = vmul.f32 %v72, %v72
    %v80 = vadd.f32 %v70, %v79
    %v81 = vld [vmem:[#allocation3 + $0x10] sm:$0xff]
    %v82 = vld [vmem:[#allocation5 + $0x10] sm:$0xff]
    %v83 = vadd.f32 %v73, %v81
    %v84 = vadd.f32 %v74, %v82
    %v85 = vmul.f32 %v81, %v82
    %v86 = vadd.f32 %v76, %v85
    %v87 = vmul.f32 %v81, %v81
    %v88 = vadd.f32 %v78, %v87
    %v89 = vmul.f32 %v82, %v82
    %v90 = vadd.f32 %v80, %v89
    %v91 = vld [vmem:[#allocation3 + $0x18] sm:$0xff]
    %v92 = vld [vmem:[#allocation5 + $0x18] sm:$0xff]
    %v93 = vadd.f32 %v83, %v91
    %v94 = vadd.f32 %v84, %v92
    %v95 = vmul.f32 %v91, %v92
    %v96 = vadd.f32 %v86, %v95
    %v97 = vmul.f32 %v91, %v91
    %v98 = vadd.f32 %v88, %v97
    %v99 = vmul.f32 %v92, %v92
    %v100 = vadd.f32 %v90, %v99
    %v101 = vld [vmem:[#allocation3 + $0x20] sm:$0xff]
    %v102 = vld [vmem:[#allocation5 + $0x20] sm:$0xff]
    %v103 = vadd.f32 %v93, %v101
    %v104 = vadd.f32 %v94, %v102
    %v105 = vmul.f32 %v101, %v102
    %v106 = vadd.f32 %v96, %v105
    %v107 = vmul.f32 %v101, %v101
    %v108 = vadd.f32 %v98, %v107
    %v109 = vmul.f32 %v102, %v102
    %v110 = vadd.f32 %v100, %v109
    %v111 = vld [vmem:[#allocation3 + $0x28] sm:$0xff]
    %v112 = vld [vmem:[#allocation5 + $0x28] sm:$0xff]
    %v113 = vadd.f32 %v103, %v111
    %v114 = vadd.f32 %v104, %v112
    %v115 = vmul.f32 %v111, %v112
    %v116 = vadd.f32 %v106, %v115
    %v117 = vmul.f32 %v111, %v111
    %v118 = vadd.f32 %v108, %v117
    %v119 = vmul.f32 %v112, %v112
    %v120 = vadd.f32 %v110, %v119
    %v121 = vld [vmem:[#allocation3 + $0x30] sm:$0xff]
    %v122 = vld [vmem:[#allocation5 + $0x30] sm:$0xff]
    %v123 = vadd.f32 %v113, %v121
    %v124 = vadd.f32 %v114, %v122
    %v125 = vmul.f32 %v121, %v122
    %v126 = vadd.f32 %v116, %v125
    %v127 = vmul.f32 %v121, %v121
    %v128 = vadd.f32 %v118, %v127
    %v129 = vmul.f32 %v122, %v122
    %v130 = vadd.f32 %v120, %v129
    %v131 = vld [vmem:[#allocation3 + $0x38] sm:$0xff]
    %v132 = vld [vmem:[#allocation5 + $0x38] sm:$0xff]
    %v133 = vadd.f32 %v123, %v131
    %v134 = vadd.f32 %v124, %v132
    %v135 = vmul.f32 %v131, %v132
    %v136 = vadd.f32 %v126, %v135
    %v137 = vmul.f32 %v131, %v131
    %v138 = vadd.f32 %v128, %v137
    %v139 = vmul.f32 %v132, %v132
    %v140 = vadd.f32 %v130, %v139
    %141 = vst [vmem:[#allocation2] sm:$0xff] %v133
    %142 = vst [vmem:[#allocation2 + $0x8] sm:$0xff] %v134
    %143 = vst [vmem:[#allocation2 + $0x10] sm:$0xff] %v136
    %144 = vst [vmem:[#allocation2 + $0x18] sm:$0xff] %v138
    %145 = vst [vmem:[#allocation2 + $0x20] sm:$0xff] %v140
    // Predicated region
    $region22: #{tpu_custom_call.1} parent=1 // pred_check
      %p146 = pneg %p47
    $region23: #{tpu_custom_call.1} parent=1 // pred_check_branch
      %148 = sbr.rel (%p146) target = $region25
    $region24: #{tpu_custom_call.1} parent=1 // pred_region
      %v149 = vld [vmem:[#allocation2] sm:$0xff]
      %150 = vadd.xlane.f32.xlu0 %v149
      %v151 = vpop.xlane.xlu0 %150
      %vm152 = vcmask 7168
      %153 = vst.msk [vmem:[%s2] sm:$0xff] %vm152, %v151
      %v154 = vld [vmem:[#allocation2 + $0x8] sm:$0xff]
      %155 = vadd.xlane.f32.xlu0 %v154
      %v156 = vpop.xlane.xlu0 %155
      %vm157 = vcmask 15368
      %158 = vst.msk [vmem:[%s2] sm:$0xff] %vm157, %v156
      %v159 = vld [vmem:[#allocation2 + $0x10] sm:$0xff]
      %160 = vadd.xlane.f32.xlu0 %v159
      %v161 = vpop.xlane.xlu0 %160
      %vm162 = vcmask 23568
      %163 = vst.msk [vmem:[%s2] sm:$0xff] %vm162, %v161
      %v164 = vld [vmem:[#allocation2 + $0x18] sm:$0xff]
      %165 = vadd.xlane.f32.xlu0 %v164
      %v166 = vpop.xlane.xlu0 %165
      %vm167 = vcmask 31768
      %168 = vst.msk [vmem:[%s2] sm:$0xff] %vm167, %v166
      %v169 = vld [vmem:[#allocation2 + $0x20] sm:$0xff]
      %170 = vadd.xlane.f32.xlu0 %v169
      %v171 = vpop.xlane.xlu0 %170
      %vm172 = vcmask 39968
      %173 = vst.msk [vmem:[%s2] sm:$0xff] %vm172, %v171
    $region25: #{tpu_custom_call.1} parent=1 // pred_fallthru
      _
    // Predicated region
    $region26: #{tpu_custom_call.1} parent=1 // pred_check
      _
    $region27: #{tpu_custom_call.1} parent=1 // pred_check_branch
      %175 = sbr.rel (0) target = $region29
    $region28: #{tpu_custom_call.1} parent=1 // pred_region
      _
    $region29: #{tpu_custom_call.1} parent=1 // pred_fallthru
      _
    // Predicated region
    $region30: #{tpu_custom_call.1} parent=1 // pred_check
      _
    $region31: #{tpu_custom_call.1} parent=1 // pred_check_branch
      %177 = sbr.rel (0) target = $region33
    $region32: #{tpu_custom_call.1} parent=1 // pred_region
      _
    $region33: #{tpu_custom_call.1} parent=1 // pred_fallthru
      _
    %178 = vsyncpa [#allocation4], 1
    %179 = vsyncpa [#allocation6], 1

</llo_original>
